<compile_context>
chip_gen: v6e
topology: v6e:2x2x1
jax: 0.10.0
libtpu: 0.0.40
codegen_flags: <defaults>
</compile_context>

<pallas_src>
import functools

import jax
import jax.numpy as jnp
from jax.experimental import pallas as pl
from jax.experimental.pallas import tpu as pltpu


def _round_up(n, m):
    return ((n + m - 1) // m) * m


def _cdiv(a, b):
    return (a + b - 1) // b


# ---------------------------------------------------------------------------
# Kernel.  grid = (batch_tiles, k_tiles), k innermost ("arbitrary").
# fc1 is a K-streamed matmul into an f32 VMEM accumulator; when W1 fits in
# VMEM there is a single K step and W1 stays resident across batch tiles.
# ReLU + fused mu|logvar head matmul + lane-dense store run under
# pl.when(k == last).
# ---------------------------------------------------------------------------
def rna_encoder_kernel(x_ref, w1_ref, b1_ref, wh_ref, bh_ref, out_ref, acc_ref,
                       *, input_dim, k_tile, mask_k):
    k = pl.program_id(1)

    @pl.when(k == 0)
    def _init():
        acc_ref[...] = jnp.zeros_like(acc_ref)

    x = x_ref[...]
    w1 = w1_ref[...]
    if mask_k:
        # Ragged K tail: x columns / W1 rows past the true input_dim are
        # out-of-bounds reads (unspecified, possibly NaN) -> zero them so the
        # extra MXU lanes contribute exactly 0.  VPU work hides under the MXU.
        off = k * k_tile
        cols = jax.lax.broadcasted_iota(jnp.int32, x.shape, 1) + off
        x = jnp.where(cols < input_dim, x, 0.0)
        rows = jax.lax.broadcasted_iota(jnp.int32, w1.shape, 0) + off
        w1 = jnp.where(rows < input_dim, w1, jnp.zeros_like(w1))

    # fc1 partial product on the MXU, f32 accumulation.
    acc_ref[...] += jnp.dot(x.astype(w1.dtype), w1,
                            preferred_element_type=jnp.float32)

    @pl.when(k == pl.num_programs(1) - 1)
    def _finish():
        # f32 epilogue (bias + ReLU), fused mu|logvar head matmul, and a single
        # lane-dense (TB, head_pad) store (unmasked vst).
        h = jnp.maximum(acc_ref[...] + b1_ref[...], 0.0)
        y = jnp.dot(h.astype(wh_ref.dtype), wh_ref[...],
                    preferred_element_type=jnp.float32)
        out_ref[...] = (y + bh_ref[...]).astype(out_ref.dtype)


# ---------------------------------------------------------------------------
# One-time parameter preparation (keeps the per-call path free of transposes).
# ---------------------------------------------------------------------------
def prepare_kernel_params(params, *, compute_dtype=jnp.bfloat16, lane=128):
    """Convert PyTorch-convention params into kernel-ready layout ONCE.

    PyTorch:  w1 (hidden, input), b1 (hidden,), wmu/wlv (latent, hidden),
              bmu/blv (latent,)
    Kernel:   w1t   (input, hidden_pad)      [in, out], hidden zero-padded
              b1    (1, hidden_pad)          f32
              whead (hidden_pad, head_pad)   [ Wmu^T | Wlv^T | 0 ],
                                             head_pad = round_up(2*latent, 128)
              bhead (1, head_pad)            f32

    bf16 weights are the default (MXU-native); pass compute_dtype=jnp.float32
    for tighter numerics at 2-4x lower matmul throughput.
    """
    hidden, input_dim = params["w1"].shape
    latent = params["wmu"].shape[0]
    hidden_pad = _round_up(hidden, lane)
    head_pad = _round_up(2 * latent, lane)

    w1t = jnp.zeros((input_dim, hidden_pad), compute_dtype)
    w1t = w1t.at[:, :hidden].set(params["w1"].T.astype(compute_dtype))
    b1 = jnp.zeros((1, hidden_pad), jnp.float32)
    b1 = b1.at[0, :hidden].set(params["b1"].astype(jnp.float32))

    whead = jnp.zeros((hidden_pad, head_pad), compute_dtype)
    whead = whead.at[:hidden, :latent].set(params["wmu"].T.astype(compute_dtype))
    whead = whead.at[:hidden, latent:2 * latent].set(
        params["wlv"].T.astype(compute_dtype))
    bhead = jnp.zeros((1, head_pad), jnp.float32)
    bhead = bhead.at[0, :latent].set(params["bmu"].astype(jnp.float32))
    bhead = bhead.at[0, latent:2 * latent].set(params["blv"].astype(jnp.float32))

    return {"w1t": w1t, "b1": b1, "whead": whead, "bhead": bhead,
            "dims": (input_dim, hidden, hidden_pad, latent, head_pad)}


# ---------------------------------------------------------------------------
# VMEM-budget-derived tiling.
# ---------------------------------------------------------------------------
def _vmem_capacity_bytes():
    try:
        return int(pltpu.get_tpu_info().vmem_capacity_bytes)
    except Exception:
        return 64 * 1024 * 1024          # conservative fallback (v7x per-core)


def _choose_tiling(batch, dims, x_itemsize, w_itemsize, out_itemsize,
                   *, max_batch_tile=None, k_tile=None):
    input_dim, hidden, hidden_pad, latent, head_pad = dims
    capacity = _vmem_capacity_bytes()
    budget = (capacity * 3) // 4         # headroom for Mosaic internal scratch

    # Small invariant operands, conservatively counted double-buffered in case
    # the single-buffer pipeline hint is unavailable.
    fixed = 2 * hidden_pad * head_pad * w_itemsize + 2 * (hidden_pad + head_pad) * 4
    avail0 = max(budget - fixed, 1 << 20)

    # fc1 K tiling: keep W1 fully resident (one HBM read per call) when it fits
    # in half the budget; otherwise stream K slabs (v7x 64 MiB / huge inputs).
    if k_tile is not None:
        tk = min(int(k_tile), input_dim)
    elif 2 * input_dim * hidden_pad * w_itemsize <= avail0 // 2:
        tk = input_dim
    else:
        tk = (avail0 // 4) // (2 * hidden_pad * w_itemsize) // 128 * 128
        tk = int(max(128, min(tk, input_dim)))
    assert tk == input_dim or tk % 128 == 0, "k_tile must be a multiple of 128"
    num_k = _cdiv(input_dim, tk)

    # Batch tile from what's left: double-buffered x / out tiles plus the f32
    # accumulator and epilogue temporaries, all per row.
    per_row = (2 * tk * x_itemsize + 2 * head_pad * out_itemsize
               + hidden_pad * 4 + hidden_pad * w_itemsize + head_pad * 4)
    avail = budget - fixed - 2 * tk * hidden_pad * w_itemsize
    tb_max = max(8, min(1024, (max(avail, 0) // per_row) // 8 * 8))
    if max_batch_tile is not None:
        tb_max = max(8, min(tb_max, _round_up(int(max_batch_tile), 8)))

    # Balance batch tiles so the ragged tail is small.
    n_tiles = max(1, _cdiv(batch, tb_max))
    tb = min(tb_max, _round_up(_cdiv(batch, n_tiles), 8))
    return tb, tk, num_k, capacity


# ---------------------------------------------------------------------------
# Forward
# ---------------------------------------------------------------------------
_USE_SINGLE_BUFFER = [True]   # cleared once if pl.Buffered(1) is unsupported


def rna_encoder_forward(x, kparams, *, max_batch_tile=None, k_tile=None):
    """Returns (mu, logvar) for x of shape (..., input_dim)."""
    input_dim, hidden, hidden_pad, latent, head_pad = kparams["dims"]
    w1t, b1 = kparams["w1t"], kparams["b1"]
    whead, bhead = kparams["whead"], kparams["bhead"]

    assert x.shape[-1] == input_dim
    lead = x.shape[:-1]
    x2d = x.reshape((-1, input_dim))
    B = x2d.shape[0]
    assert B > 0

    x_item = jnp.dtype(x2d.dtype).itemsize
    w_item = jnp.dtype(w1t.dtype).itemsize
    out_dtype = x2d.dtype
    out_item = jnp.dtype(out_dtype).itemsize

    tb, tk, num_k, capacity = _choose_tiling(
        B, kparams["dims"], x_item, w_item, out_item,
        max_batch_tile=max_batch_tile, k_tile=k_tile)
    grid = (_cdiv(B, tb), num_k)
    # Note: the final batch tile may read past B; those rows are unspecified,
    # but rows are independent and their output rows are dropped on writeback.

    kernel = functools.partial(
        rna_encoder_kernel, input_dim=input_dim, k_tile=tk,
        mask_k=(num_k > 1 and input_dim % tk != 0))

    weight_bytes = ((input_dim * hidden_pad) * (grid[0] if num_k > 1 else 1)
                    + hidden_pad * head_pad) * w_item + (hidden_pad + head_pad) * 4
    cost = pl.CostEstimate(
        flops=2 * B * (input_dim * hidden + hidden * 2 * latent),  # unpadded
        transcendentals=0,
        bytes_accessed=int(B * input_dim * x_item + weight_bytes
                           + B * head_pad * out_item),             # + writeback
    )
    # Clamp to physical per-core VMEM minus internal-scratch headroom.
    vmem_limit = int(max(32 * 1024 * 1024, capacity - 4 * 1024 * 1024))

    def call(single_buffer):
        def const_spec(shape):
            idx = lambda i, k: (0, 0)
            if single_buffer:
                return pl.BlockSpec(shape, idx, pipeline_mode=pl.Buffered(1))
            return pl.BlockSpec(shape, idx)

        if num_k == 1:
            w1_spec = const_spec((input_dim, hidden_pad))          # resident
        else:
            w1_spec = pl.BlockSpec((tk, hidden_pad), lambda i, k: (k, 0))

        return pl.pallas_call(
            kernel,
            out_shape=jax.ShapeDtypeStruct((B, head_pad), out_dtype),
            grid=grid,
            in_specs=[
                pl.BlockSpec((tb, tk), lambda i, k: (i, k)),       # x: pipelined
                w1_spec,                                           # W1
                const_spec((1, hidden_pad)),                       # b1
                const_spec((hidden_pad, head_pad)),                # fused head W
                const_spec((1, head_pad)),                         # fused head b
            ],
            out_specs=pl.BlockSpec((tb, head_pad), lambda i, k: (i, 0)),
            scratch_shapes=[pltpu.VMEM((tb, hidden_pad), jnp.float32)],
            compiler_params=pltpu.CompilerParams(
                # TODO(synk): on v7x use pltpu.CORE_PARALLEL on the batch axis
                # (2 TensorCores); "parallel" is the portable choice here.
                dimension_semantics=("parallel", "arbitrary"),
                vmem_limit_bytes=vmem_limit,
            ),
            cost_estimate=cost,
        )(x2d, w1t, b1, whead, bhead)

    if _USE_SINGLE_BUFFER[0]:
        try:
            out = call(True)        # single-buffer the invariant weight operands
        except Exception:
            _USE_SINGLE_BUFFER[0] = False
            out = call(False)       # fallback: default (double) buffering
    else:
        out = call(False)

    mu = out[:, :latent].reshape(lead + (latent,))
    logvar = out[:, latent:2 * latent].reshape(lead + (latent,))
    return mu, logvar


# ---------------------------------------------------------------------------
# Init + pure-JAX reference (PyTorch-convention params)
# ---------------------------------------------------------------------------
def init_params(key, input_dim, latent_dim, hidden_dim):
    """nn.Linear-style init: uniform(+/- 1/sqrt(fan_in))."""
    ks = jax.random.split(key, 6)

    def lin(kw, kb, fan_in, fan_out):
        bound = 1.0 / (fan_in ** 0.5)
        w = jax.random.uniform(kw, (fan_out, fan_in), jnp.float32, -bound, bound)
        b = jax.random.uniform(kb, (fan_out,), jnp.float32, -bound, bound)
        return w, b

    w1, b1 = lin(ks[0], ks[1], input_dim, hidden_dim)
    wmu, bmu = lin(ks[2], ks[3], hidden_dim, latent_dim)
    wlv, blv = lin(ks[4], ks[5], hidden_dim, latent_dim)
    return {"w1": w1, "b1": b1, "wmu": wmu, "bmu": bmu, "wlv": wlv, "blv": blv}


def reference_forward(x, p):
    h = jnp.maximum(jnp.dot(x, p["w1"].T, precision="highest") + p["b1"], 0.0)
    mu = jnp.dot(h, p["wmu"].T, precision="highest") + p["bmu"]
    logvar = jnp.dot(h, p["wlv"].T, precision="highest") + p["blv"]
    return mu, logvar


if __name__ == "__main__":
    key = jax.random.PRNGKey(0)
    kx, kp, kx2, kp2 = jax.random.split(key, 4)

    # --- Config 1: small shapes, resident-W1 (single K step) path ---------
    batch, input_dim, hidden_dim, latent_dim = 8, 32, 64, 16
    x = jax.random.normal(kx, (batch, input_dim), jnp.float32)
    params = init_params(kp, input_dim, latent_dim, hidden_dim)
    mu_ref, lv_ref = reference_forward(x, params)

    # f32 weights: tight check against the reference.
    kp_f32 = prepare_kernel_params(params, compute_dtype=jnp.float32)
    mu, lv = rna_encoder_forward(x, kp_f32)
    jax.block_until_ready((mu, lv))
    assert mu.shape == (batch, latent_dim) and lv.shape == (batch, latent_dim)
    assert jnp.allclose(mu, mu_ref, atol=1e-4, rtol=1e-4)
    assert jnp.allclose(lv, lv_ref, atol=1e-4, rtol=1e-4)

    # bf16 weights (the performance default): looser tolerance.
    kp_bf16 = prepare_kernel_params(params)   # compute_dtype=bf16 by default
    mu_b, lv_b = rna_encoder_forward(x, kp_bf16)
    jax.block_until_ready((mu_b, lv_b))
    assert jnp.allclose(mu_b, mu_ref, atol=3e-2, rtol=3e-2)
    assert jnp.allclose(lv_b, lv_ref, atol=3e-2, rtol=3e-2)

    # --- Config 2: force the K-streaming path (ragged K and ragged batch) --
    batch2, input_dim2, hidden2, latent2 = 20, 300, 96, 20
    x2 = jax.random.normal(kx2, (batch2, input_dim2), jnp.float32)
    params2 = init_params(kp2, input_dim2, latent2, hidden2)
    kp2_f32 = prepare_kernel_params(params2, compute_dtype=jnp.float32)
    mu2, lv2 = rna_encoder_forward(x2, kp2_f32, max_batch_tile=16, k_tile=128)
    jax.block_until_ready((mu2, lv2))
    mu2_ref, lv2_ref = reference_forward(x2, params2)
    assert mu2.shape == (batch2, latent2) and lv2.shape == (batch2, latent2)
    assert jnp.allclose(mu2, mu2_ref, atol=1e-4, rtol=1e-4)
    assert jnp.allclose(lv2, lv2_ref, atol=1e-4, rtol=1e-4)

    print("KERNEL_OK")
</pallas_src>

<mosaic_0001>
module attributes {stable_mosaic.version = 11 : i64} {
  func.func @rna_encoder_kernel(%arg0: i32, %arg1: i32, %arg2: memref<8x32xf32, #tpu.memory_space<vmem>>, %arg3: memref<32x128xf32, #tpu.memory_space<vmem>>, %arg4: memref<1x128xf32, #tpu.memory_space<vmem>>, %arg5: memref<128x128xf32, #tpu.memory_space<vmem>>, %arg6: memref<1x128xf32, #tpu.memory_space<vmem>>, %arg7: memref<8x128xf32, #tpu.memory_space<vmem>>, %arg8: memref<8x128xf32, #tpu.memory_space<vmem>>) attributes {dimension_semantics = [#tpu.dimension_semantics<parallel>, #tpu.dimension_semantics<arbitrary>], iteration_bounds = array<i64: 1, 1>, scalar_prefetch = 0 : i64, scratch_operands = 1 : i64, tpu.core_type = #tpu.core_type<tc>, window_params = [{transform_indices = @transform_0, window_bounds = array<i64: 8, 32>}, {pipeline_mode = #tpu.pipeline_mode<synchronous>, transform_indices = @transform_1, window_bounds = array<i64: 32, 128>}, {pipeline_mode = #tpu.pipeline_mode<synchronous>, transform_indices = @transform_2, window_bounds = array<i64: 1, 128>}, {pipeline_mode = #tpu.pipeline_mode<synchronous>, transform_indices = @transform_3, window_bounds = array<i64: 128, 128>}, {pipeline_mode = #tpu.pipeline_mode<synchronous>, transform_indices = @transform_4, window_bounds = array<i64: 1, 128>}, {transform_indices = @transform_5, window_bounds = array<i64: 8, 128>}]} {
    %c0_i32 = arith.constant 0 : i32
    %0 = arith.cmpi eq, %arg1, %c0_i32 : i32
    %1 = arith.extui %0 : i1 to i32
    %c0_i32_0 = arith.constant 0 : i32
    %2 = arith.cmpi ne, %1, %c0_i32_0 : i32
    scf.if %2 {
      %cst_10 = arith.constant 0.000000e+00 : f32
      %12 = vector.broadcast %cst_10 : f32 to vector<8x128xf32>
      %c0_11 = arith.constant 0 : index
      %c0_12 = arith.constant 0 : index
      %13 = vector.load %arg8[%c0_11, %c0_12] : memref<8x128xf32, #tpu.memory_space<vmem>>, vector<8x128xf32>
      tpu.vector_store %arg8[%c0_11, %c0_12], %12 {strides = array<i32>} : memref<8x128xf32, #tpu.memory_space<vmem>>, vector<8x128xf32>,
    } else {
    }
    %c0 = arith.constant 0 : index
    %c0_1 = arith.constant 0 : index
    %3 = vector.load %arg2[%c0, %c0_1] : memref<8x32xf32, #tpu.memory_space<vmem>>, vector<8x32xf32>
    %c0_2 = arith.constant 0 : index
    %c0_3 = arith.constant 0 : index
    %4 = vector.load %arg3[%c0_2, %c0_3] : memref<32x128xf32, #tpu.memory_space<vmem>>, vector<32x128xf32>
    %c0_4 = arith.constant 0 : index
    %c0_5 = arith.constant 0 : index
    %5 = vector.load %arg8[%c0_4, %c0_5] : memref<8x128xf32, #tpu.memory_space<vmem>>, vector<8x128xf32>
    %cst = arith.constant dense<0.000000e+00> : vector<8x128xf32>
    %6 = tpu.matmul %3, %4, %cst {dimension_numbers = #tpu.dot_dimension_numbers<[1], [0], [0], [1], [0, 0, 1, 1], [], []>} : vector<8x32xf32>, vector<32x128xf32>, vector<8x128xf32> -> vector<8x128xf32>
    %7 = arith.addf %5, %6 : vector<8x128xf32>
    %c0_6 = arith.constant 0 : index
    %c0_7 = arith.constant 0 : index
    %8 = vector.load %arg8[%c0_6, %c0_7] : memref<8x128xf32, #tpu.memory_space<vmem>>, vector<8x128xf32>
    tpu.vector_store %arg8[%c0_6, %c0_7], %7 {strides = array<i32>} : memref<8x128xf32, #tpu.memory_space<vmem>>, vector<8x128xf32>,
    %c0_i32_8 = arith.constant 0 : i32
    %9 = arith.cmpi eq, %arg1, %c0_i32_8 : i32
    %10 = arith.extui %9 : i1 to i32
    %c0_i32_9 = arith.constant 0 : i32
    %11 = arith.cmpi ne, %10, %c0_i32_9 : i32
    scf.if %11 {
      %c0_10 = arith.constant 0 : index
      %c0_11 = arith.constant 0 : index
      %12 = vector.load %arg8[%c0_10, %c0_11] : memref<8x128xf32, #tpu.memory_space<vmem>>, vector<8x128xf32>
      %c0_12 = arith.constant 0 : index
      %c0_13 = arith.constant 0 : index
      %13 = vector.load %arg4[%c0_12, %c0_13] : memref<1x128xf32, #tpu.memory_space<vmem>>, vector<1x128xf32>
      %14 = vector.broadcast %13 : vector<1x128xf32> to vector<8x128xf32>
      %15 = arith.addf %12, %14 : vector<8x128xf32>
      %cst_14 = arith.constant 0.000000e+00 : f32
      %16 = vector.broadcast %cst_14 : f32 to vector<8x128xf32>
      %17 = arith.maximumf %15, %16 : vector<8x128xf32>
      %c0_15 = arith.constant 0 : index
      %c0_16 = arith.constant 0 : index
      %18 = vector.load %arg5[%c0_15, %c0_16] : memref<128x128xf32, #tpu.memory_space<vmem>>, vector<128x128xf32>
      %cst_17 = arith.constant dense<0.000000e+00> : vector<8x128xf32>
      %19 = tpu.matmul %17, %18, %cst_17 {dimension_numbers = #tpu.dot_dimension_numbers<[1], [0], [0], [1], [0, 0, 1, 1], [], []>} : vector<8x128xf32>, vector<128x128xf32>, vector<8x128xf32> -> vector<8x128xf32>
      %c0_18 = arith.constant 0 : index
      %c0_19 = arith.constant 0 : index
      %20 = vector.load %arg6[%c0_18, %c0_19] : memref<1x128xf32, #tpu.memory_space<vmem>>, vector<1x128xf32>
      %21 = vector.broadcast %20 : vector<1x128xf32> to vector<8x128xf32>
      %22 = arith.addf %19, %21 : vector<8x128xf32>
      %c0_20 = arith.constant 0 : index
      %c0_21 = arith.constant 0 : index
      %23 = vector.load %arg7[%c0_20, %c0_21] : memref<8x128xf32, #tpu.memory_space<vmem>>, vector<8x128xf32>
      tpu.vector_store %arg7[%c0_20, %c0_21], %22 {strides = array<i32>} : memref<8x128xf32, #tpu.memory_space<vmem>>, vector<8x128xf32>,
    } else {
    }
    return
  }
  func.func @transform_0(%arg0: i32, %arg1: i32) -> (i32, i32) {
    %c0_i32 = arith.constant 0 : i32
    return %arg0, %arg1 : i32, i32
  }
  func.func @transform_1(%arg0: i32, %arg1: i32) -> (i32, i32) {
    %c0_i32 = arith.constant 0 : i32
    %c0_i32_0 = arith.constant 0 : i32
    %c0_i32_1 = arith.constant 0 : i32
    return %c0_i32, %c0_i32_0 : i32, i32
  }
  func.func @transform_2(%arg0: i32, %arg1: i32) -> (i32, i32) {
    %c0_i32 = arith.constant 0 : i32
    %c0_i32_0 = arith.constant 0 : i32
    %c0_i32_1 = arith.constant 0 : i32
    return %c0_i32, %c0_i32_0 : i32, i32
  }
  func.func @transform_3(%arg0: i32, %arg1: i32) -> (i32, i32) {
    %c0_i32 = arith.constant 0 : i32
    %c0_i32_0 = arith.constant 0 : i32
    %c0_i32_1 = arith.constant 0 : i32
    return %c0_i32, %c0_i32_0 : i32, i32
  }
  func.func @transform_4(%arg0: i32, %arg1: i32) -> (i32, i32) {
    %c0_i32 = arith.constant 0 : i32
    %c0_i32_0 = arith.constant 0 : i32
    %c0_i32_1 = arith.constant 0 : i32
    return %c0_i32, %c0_i32_0 : i32, i32
  }
  func.func @transform_5(%arg0: i32, %arg1: i32) -> (i32, i32) {
    %c0_i32 = arith.constant 0 : i32
    %c0_i32_0 = arith.constant 0 : i32
    return %arg0, %c0_i32 : i32, i32
  }
}

module attributes {stable_mosaic.version = 11 : i64} {
  func.func @rna_encoder_kernel(%arg0: i32, %arg1: i32, %arg2: memref<8x32xf32, #tpu.memory_space<vmem>>, %arg3: memref<32x128xf32, #tpu.memory_space<vmem>>, %arg4: memref<1x128xf32, #tpu.memory_space<vmem>>, %arg5: memref<128x128xf32, #tpu.memory_space<vmem>>, %arg6: memref<1x128xf32, #tpu.memory_space<vmem>>, %arg7: memref<8x128xf32, #tpu.memory_space<vmem>>, %arg8: memref<8x128xf32, #tpu.memory_space<vmem>>) attributes {dimension_semantics = [#tpu.dimension_semantics<parallel>, #tpu.dimension_semantics<arbitrary>], iteration_bounds = array<i64: 1, 1>, scalar_prefetch = 0 : i64, scratch_operands = 1 : i64, tpu.core_type = #tpu.core_type<tc>, window_params = [{transform_indices = @transform_0, window_bounds = array<i64: 8, 32>}, {pipeline_mode = #tpu.pipeline_mode<synchronous>, transform_indices = @transform_1, window_bounds = array<i64: 32, 128>}, {pipeline_mode = #tpu.pipeline_mode<synchronous>, transform_indices = @transform_2, window_bounds = array<i64: 1, 128>}, {pipeline_mode = #tpu.pipeline_mode<synchronous>, transform_indices = @transform_3, window_bounds = array<i64: 128, 128>}, {pipeline_mode = #tpu.pipeline_mode<synchronous>, transform_indices = @transform_4, window_bounds = array<i64: 1, 128>}, {transform_indices = @transform_5, window_bounds = array<i64: 8, 128>}]} {
    %c0_i32 = arith.constant 0 : i32
    %0 = arith.cmpi eq, %arg1, %c0_i32 : i32
    %1 = arith.extui %0 : i1 to i32
    %c0_i32_0 = arith.constant 0 : i32
    %2 = arith.cmpi ne, %1, %c0_i32_0 : i32
    scf.if %2 {
      %cst_10 = arith.constant 0.000000e+00 : f32
      %12 = vector.broadcast %cst_10 : f32 to vector<8x128xf32>
      %c0_11 = arith.constant 0 : index
      %c0_12 = arith.constant 0 : index
      %13 = vector.load %arg8[%c0_11, %c0_12] : memref<8x128xf32, #tpu.memory_space<vmem>>, vector<8x128xf32>
      tpu.vector_store %arg8[%c0_11, %c0_12], %12 {strides = array<i32>} : memref<8x128xf32, #tpu.memory_space<vmem>>, vector<8x128xf32>,
    } else {
    }
    %c0 = arith.constant 0 : index
    %c0_1 = arith.constant 0 : index
    %3 = vector.load %arg2[%c0, %c0_1] : memref<8x32xf32, #tpu.memory_space<vmem>>, vector<8x32xf32>
    %c0_2 = arith.constant 0 : index
    %c0_3 = arith.constant 0 : index
    %4 = vector.load %arg3[%c0_2, %c0_3] : memref<32x128xf32, #tpu.memory_space<vmem>>, vector<32x128xf32>
    %c0_4 = arith.constant 0 : index
    %c0_5 = arith.constant 0 : index
    %5 = vector.load %arg8[%c0_4, %c0_5] : memref<8x128xf32, #tpu.memory_space<vmem>>, vector<8x128xf32>
    %cst = arith.constant dense<0.000000e+00> : vector<8x128xf32>
    %6 = tpu.matmul %3, %4, %cst {dimension_numbers = #tpu.dot_dimension_numbers<[1], [0], [0], [1], [0, 0, 1, 1], [], []>} : vector<8x32xf32>, vector<32x128xf32>, vector<8x128xf32> -> vector<8x128xf32>
    %7 = arith.addf %5, %6 : vector<8x128xf32>
    %c0_6 = arith.constant 0 : index
    %c0_7 = arith.constant 0 : index
    %8 = vector.load %arg8[%c0_6, %c0_7] : memref<8x128xf32, #tpu.memory_space<vmem>>, vector<8x128xf32>
    tpu.vector_store %arg8[%c0_6, %c0_7], %7 {strides = array<i32>} : memref<8x128xf32, #tpu.memory_space<vmem>>, vector<8x128xf32>,
    %c0_i32_8 = arith.constant 0 : i32
    %9 = arith.cmpi eq, %arg1, %c0_i32_8 : i32
    %10 = arith.extui %9 : i1 to i32
    %c0_i32_9 = arith.constant 0 : i32
    %11 = arith.cmpi ne, %10, %c0_i32_9 : i32
    scf.if %11 {
      %c0_10 = arith.constant 0 : index
      %c0_11 = arith.constant 0 : index
      %12 = vector.load %arg8[%c0_10, %c0_11] : memref<8x128xf32, #tpu.memory_space<vmem>>, vector<8x128xf32>
      %c0_12 = arith.constant 0 : index
      %c0_13 = arith.constant 0 : index
      %13 = vector.load %arg4[%c0_12, %c0_13] : memref<1x128xf32, #tpu.memory_space<vmem>>, vector<1x128xf32>
      %14 = vector.broadcast %13 : vector<1x128xf32> to vector<8x128xf32>
      %15 = arith.addf %12, %14 : vector<8x128xf32>
      %cst_14 = arith.constant 0.000000e+00 : f32
      %16 = vector.broadcast %cst_14 : f32 to vector<8x128xf32>
      %17 = arith.maximumf %15, %16 : vector<8x128xf32>
      %c0_15 = arith.constant 0 : index
      %c0_16 = arith.constant 0 : index
      %18 = vector.load %arg5[%c0_15, %c0_16] : memref<128x128xf32, #tpu.memory_space<vmem>>, vector<128x128xf32>
      %cst_17 = arith.constant dense<0.000000e+00> : vector<8x128xf32>
      %19 = tpu.matmul %17, %18, %cst_17 {dimension_numbers = #tpu.dot_dimension_numbers<[1], [0], [0], [1], [0, 0, 1, 1], [], []>} : vector<8x128xf32>, vector<128x128xf32>, vector<8x128xf32> -> vector<8x128xf32>
      %c0_18 = arith.constant 0 : index
      %c0_19 = arith.constant 0 : index
      %20 = vector.load %arg6[%c0_18, %c0_19] : memref<1x128xf32, #tpu.memory_space<vmem>>, vector<1x128xf32>
      %21 = vector.broadcast %20 : vector<1x128xf32> to vector<8x128xf32>
      %22 = arith.addf %19, %21 : vector<8x128xf32>
      %c0_20 = arith.constant 0 : index
      %c0_21 = arith.constant 0 : index
      %23 = vector.load %arg7[%c0_20, %c0_21] : memref<8x128xf32, #tpu.memory_space<vmem>>, vector<8x128xf32>
      tpu.vector_store %arg7[%c0_20, %c0_21], %22 {strides = array<i32>} : memref<8x128xf32, #tpu.memory_space<vmem>>, vector<8x128xf32>,
    } else {
    }
    return
  }
  func.func @transform_0(%arg0: i32, %arg1: i32) -> (i32, i32) {
    %c0_i32 = arith.constant 0 : i32
    return %arg0, %arg1 : i32, i32
  }
  func.func @transform_1(%arg0: i32, %arg1: i32) -> (i32, i32) {
    %c0_i32 = arith.constant 0 : i32
    %c0_i32_0 = arith.constant 0 : i32
    %c0_i32_1 = arith.constant 0 : i32
    return %c0_i32, %c0_i32_0 : i32, i32
  }
  func.func @transform_2(%arg0: i32, %arg1: i32) -> (i32, i32) {
    %c0_i32 = arith.constant 0 : i32
    %c0_i32_0 = arith.constant 0 : i32
    %c0_i32_1 = arith.constant 0 : i32
    return %c0_i32, %c0_i32_0 : i32, i32
  }
  func.func @transform_3(%arg0: i32, %arg1: i32) -> (i32, i32) {
    %c0_i32 = arith.constant 0 : i32
    %c0_i32_0 = arith.constant 0 : i32
    %c0_i32_1 = arith.constant 0 : i32
    return %c0_i32, %c0_i32_0 : i32, i32
  }
  func.func @transform_4(%arg0: i32, %arg1: i32) -> (i32, i32) {
    %c0_i32 = arith.constant 0 : i32
    %c0_i32_0 = arith.constant 0 : i32
    %c0_i32_1 = arith.constant 0 : i32
    return %c0_i32, %c0_i32_0 : i32, i32
  }
  func.func @transform_5(%arg0: i32, %arg1: i32) -> (i32, i32) {
    %c0_i32 = arith.constant 0 : i32
    %c0_i32_0 = arith.constant 0 : i32
    return %arg0, %c0_i32 : i32, i32
  }
}

</mosaic_0001>

<llo_original>
// kernel: tpu_custom_call.1
$region0: #{tpu_custom_call.1}
  #allocation0 [shape = 'u32[]', space=smem, size = 0x4, offset = 0x4, fixed_abs, tag = 'smem constant byte address 0x4 - core index']
  #allocation1 [shape = 'u32[144,128]{1,0:T(1,128)}', space=vmem, size = 0x12000, scoped, tag = 'internal scratch']
  #allocation2 [shape = 'f32[8,128]{1,0:T(8,128)}', space=vmem, size = 0x1000, scoped, tag = 'scratch operand']
  %s0 = inlined_call_operand.hbm [shape: f32[8,32], index: 0, kind: input, shape index: {}]
  %s1 = inlined_call_operand.hbm [shape: f32[32,128], index: 1, kind: input, shape index: {}]
  %s2 = inlined_call_operand.vmem [shape: f32[1,128], index: 2, kind: input, shape index: {}]
  %s3 = inlined_call_operand.hbm [shape: f32[128,128], index: 3, kind: input, shape index: {}]
  %s4 = inlined_call_operand.vmem [shape: f32[1,128], index: 4, kind: input, shape index: {}]
  %s5 = inlined_call_operand.hbm [shape: f32[8,128], index: 5, kind: output, shape index: {}]
  %s6 = sld [smem:[#allocation0]]
  $region50: #{tpu_custom_call.1} parent=0
    _
  %s8 = ssub.s32 1, %s6
  %s9 = scalar_select 0, %s8, %s6
  $region1: #{tpu_custom_call.1} parent=0
    #allocation3 [shape = 'u8[4096]{0}', space=vmem, size = 0x1000, scoped, tag = 'input window, operand 0, single buffered']
    #allocation4 [shape = 's32[1]{0}', space=sflag, size = 0x4, scoped, tag = 'scoped memory for tpu_custom_call.1']
    #allocation5 [shape = 's32[1]{0}', space=sflag, size = 0x4, scoped, tag = 'scoped memory for tpu_custom_call.1']
    #allocation6 [shape = 'u8[16384]{0}', space=vmem, size = 0x4000, scoped, tag = 'input window, operand 1, single buffered']
    #allocation7 [shape = 's32[1]{0}', space=sflag, size = 0x4, scoped, tag = 'scoped memory for tpu_custom_call.1']
    #allocation8 [shape = 'u8[65536]{0}', space=vmem, size = 0x10000, scoped, tag = 'input window, operand 3, single buffered']
    #allocation9 [shape = 'u8[4096]{0}', space=vmem, size = 0x1000, scoped, tag = 'output window, operand 0, single buffered']
    %10 = vsyncpa [#allocation4], 0
    %11 = vsyncpa [#allocation7], 0
    %12 = vsyncpa [#allocation5], 0
    // Predicated region
    $region2: #{tpu_custom_call.1} parent=1 // pred_check
      _
    $region3: #{tpu_custom_call.1} parent=1 // pred_check_branch
      %14 = sbr.rel (0) target = $region5
    $region4: #{tpu_custom_call.1} parent=1 // pred_region
      %s16 = ssub.s32 128, 128
      %17 = vsyncadd [#allocation4], %s16
      %s19 = sshll.u32 [#allocation3], 4
      %s20 = int_to_ptr.vmem [resolvable:$true] %s19
      %22 = dma.hbm_to_vmem [thread:$0]  %s0, 128, %s20, [#allocation4]
    $region5: #{tpu_custom_call.1} parent=1 // pred_fallthru
      _
    // Predicated region
    $region6: #{tpu_custom_call.1} parent=1 // pred_check
      _
    $region7: #{tpu_custom_call.1} parent=1 // pred_check_branch
      %24 = sbr.rel (0) target = $region9
    $region8: #{tpu_custom_call.1} parent=1 // pred_region
      %s26 = ssub.s32 512, 512
      %27 = vsyncadd [#allocation7], %s26
      %s28 = sshll.u32 [#allocation6], 4
      %s29 = int_to_ptr.vmem [resolvable:$true] %s28
      %34 = dma.hbm_to_vmem [thread:$0]  %s1, 512, %s29, [#allocation7], 128, 128, 8
    $region9: #{tpu_custom_call.1} parent=1 // pred_fallthru
      _
    // Predicated region
    $region10: #{tpu_custom_call.1} parent=1 // pred_check
      _
    $region11: #{tpu_custom_call.1} parent=1 // pred_check_branch
      %36 = sbr.rel (0) target = $region13
    $region12: #{tpu_custom_call.1} parent=1 // pred_region
      _
    $region13: #{tpu_custom_call.1} parent=1 // pred_fallthru
      _
    // Predicated region
    $region14: #{tpu_custom_call.1} parent=1 // pred_check
      _
    $region15: #{tpu_custom_call.1} parent=1 // pred_check_branch
      %38 = sbr.rel (0) target = $region17
    $region16: #{tpu_custom_call.1} parent=1 // pred_region
      %s40 = ssub.s32 2048, 2048
      %41 = vsyncadd [#allocation7], %s40
      %s42 = sshll.u32 [#allocation8], 4
      %s43 = int_to_ptr.vmem [resolvable:$true] %s42
      %48 = dma.hbm_to_vmem [thread:$0]  %s3, 2048, %s43, [#allocation7], 128, 128, 8
    $region17: #{tpu_custom_call.1} parent=1 // pred_fallthru
      _
    // Predicated region
    $region18: #{tpu_custom_call.1} parent=1 // pred_check
      _
    $region19: #{tpu_custom_call.1} parent=1 // pred_check_branch
      %50 = sbr.rel (0) target = $region21
    $region20: #{tpu_custom_call.1} parent=1 // pred_region
      _
    $region21: #{tpu_custom_call.1} parent=1 // pred_fallthru
      _
    // Predicated region
    $region22: #{tpu_custom_call.1} parent=1 // pred_check
      _
    $region23: #{tpu_custom_call.1} parent=1 // pred_check_branch
      %52 = sbr.rel (0) target = $region25
    $region24: #{tpu_custom_call.1} parent=1 // pred_region
      %53 = dma.done [#allocation4], 128
    $region25: #{tpu_custom_call.1} parent=1 // pred_fallthru
      _
    // Predicated region
    $region26: #{tpu_custom_call.1} parent=1 // pred_check
      _
    $region27: #{tpu_custom_call.1} parent=1 // pred_check_branch
      %55 = sbr.rel (0) target = $region29
    $region28: #{tpu_custom_call.1} parent=1 // pred_region
      %56 = dma.done [#allocation7], 512
    $region29: #{tpu_custom_call.1} parent=1 // pred_fallthru
      _
    // Predicated region
    $region30: #{tpu_custom_call.1} parent=1 // pred_check
      _
    $region31: #{tpu_custom_call.1} parent=1 // pred_check_branch
      %58 = sbr.rel (0) target = $region33
    $region32: #{tpu_custom_call.1} parent=1 // pred_region
      %59 = dma.done [#allocation7], 2048
    $region33: #{tpu_custom_call.1} parent=1 // pred_fallthru
      _
    %p60 = scmp.eq.s32.totalorder 0, 0
    // Predicated region
    $region34: #{tpu_custom_call.1} parent=1 // pred_check
      %p61 = pneg %p60
    $region35: #{tpu_custom_call.1} parent=1 // pred_check_branch
      %63 = sbr.rel (%p61) target = $region37
    $region36: #{tpu_custom_call.1} parent=1 // pred_region
      %64 = vst [vmem:[#allocation2] sm:$0xff] 0.0
    $region37: #{tpu_custom_call.1} parent=1 // pred_fallthru
      _
    %v65 = vld [vmem:[#allocation3] sm:$0xff]
    %v66 = vld [vmem:[#allocation6] sm:$0xff]
    %v67 = vld [vmem:[#allocation6 + $0x8] sm:$0xff]
    %v68 = vld [vmem:[#allocation6 + $0x10] sm:$0xff]
    %v69 = vld [vmem:[#allocation6 + $0x18] sm:$0xff]
    %v70 = vld [vmem:[#allocation2] sm:$0xff]
    %vm71 = vcmask 261120
    %v73 = vsel %vm71, %v65, 0
    %75 = vmatprep.subr.mxu0 0.0
    %76 = vmatpush1.msra.mxu0 0.0
    %77 = vmatprep.subr.mxu0 0.0
    %78 = vmatpush1.msra.mxu0 0.0
    %79 = vmatprep.subr.mxu0 0.0
    %80 = vmatpush1.msra.mxu0 0.0
    %81 = vmatprep.subr.mxu0 0.0
    %82 = vmatpush1.msra.mxu0 0.0
    %83 = vmatprep.subr.mxu0 0.0
    %84 = vmatpush1.msra.mxu0 0.0
    %85 = vmatprep.subr.mxu0 0.0
    %86 = vmatpush1.msra.mxu0 0.0
    %87 = vmatprep.subr.mxu0 0.0
    %88 = vmatpush1.msra.mxu0 0.0
    %89 = vmatprep.subr.mxu0 0.0
    %90 = vmatpush1.msra.mxu0 0.0
    %91 = vmatprep.subr.mxu0 0.0
    %92 = vmatpush1.msra.mxu0 0.0
    %93 = vmatprep.subr.mxu0 0.0
    %94 = vmatpush1.msra.mxu0 0.0
    %95 = vmatprep.subr.mxu0 0.0
    %96 = vmatpush1.msra.mxu0 0.0
    %97 = vmatprep.subr.mxu0 0.0
    %98 = vmatpush1.msra.mxu0 0.0
    %99 = vmatprep.subr.mxu0 0.0
    %100 = vmatpush1.msra.mxu0 %v69
    %101 = vmatprep.subr.mxu0 0.0
    %102 = vmatpush1.msra.mxu0 %v68
    %103 = vmatprep.subr.mxu0 0.0
    %104 = vmatpush1.msra.mxu0 %v67
    %105 = vmatprep.subr.mxu0 0.0
    %106 = vmatpush1.msra.mxu0 %v66
    %107 = vmatprep.subr.mxu0 0.0
    %108 = vmatpush2.msra.mxu0 0.0
    %109 = vmatprep.subr.mxu0 0.0
    %110 = vmatpush2.msra.mxu0 0.0
    %111 = vmatprep.subr.mxu0 0.0
    %112 = vmatpush2.msra.mxu0 0.0
    %113 = vmatprep.subr.mxu0 0.0
    %114 = vmatpush2.msra.mxu0 0.0
    %115 = vmatprep.subr.mxu0 0.0
    %116 = vmatpush2.msra.mxu0 0.0
    %117 = vmatprep.subr.mxu0 0.0
    %118 = vmatpush2.msra.mxu0 0.0
    %119 = vmatprep.subr.mxu0 0.0
    %120 = vmatpush2.msra.mxu0 0.0
    %121 = vmatprep.subr.mxu0 0.0
    %122 = vmatpush2.msra.mxu0 0.0
    %123 = vmatprep.subr.mxu0 0.0
    %124 = vmatpush2.msra.mxu0 0.0
    %125 = vmatprep.subr.mxu0 0.0
    %126 = vmatpush2.msra.mxu0 0.0
    %127 = vmatprep.subr.mxu0 0.0
    %128 = vmatpush2.msra.mxu0 0.0
    %129 = vmatprep.subr.mxu0 0.0
    %130 = vmatpush2.msra.mxu0 0.0
    %131 = vmatprep.subr.mxu0 0.0
    %132 = vmatpush2.msra.mxu0 0.0
    %133 = vmatprep.subr.mxu0 0.0
    %134 = vmatpush2.msra.mxu0 0.0
    %135 = vmatprep.subr.mxu0 0.0
    %136 = vmatpush2.msra.mxu0 0.0
    %137 = vmatprep.subr.mxu0 0.0
    %138 = vmatpush2.msra.mxu0 0.0
    %139 = vmatprep.mubr.f32.mxu0 0.0
    %140 = vmatmul.mubr.f32.gmra.mxu0 %v73
    %v141 = vpop.f32.mrf.mxu0
    %v142 = vadd.f32 0.0, %v141
    %v143 = vpop.f32.mrf.mxu0
    %144 = vdwg.mxu0
    %v145 = vadd.f32 %v70, %v142
    %146 = vst [vmem:[#allocation2] sm:$0xff] %v145
    // Predicated region
    $region38: #{tpu_custom_call.1} parent=1 // pred_check
      %p147 = pneg %p60
    $region39: #{tpu_custom_call.1} parent=1 // pred_check_branch
      %149 = sbr.rel (%p147) target = $region41
    $region40: #{tpu_custom_call.1} parent=1 // pred_region
      %v150 = vld [vmem:[#allocation2] sm:$0xff]
      %v151 = vld [vmem:[%s2] sm:$0x1]
      %v153 = vlaneseq
      %v154 = vshrl.u32 %v153, 7
      %v155 = vsub.s32 0, %v154
      %v156 = vrot.slane %v151, %v155
      %v158 = vadd.f32 %v150, %v156
      %v159 = vmax.f32 %v158, 0.0
      %v160 = vld [vmem:[#allocation8] sm:$0xff]
      %v161 = vld [vmem:[#allocation8 + $0x8] sm:$0xff]
      %v162 = vld [vmem:[#allocation8 + $0x10] sm:$0xff]
      %v163 = vld [vmem:[#allocation8 + $0x18] sm:$0xff]
      %v164 = vld [vmem:[#allocation8 + $0x20] sm:$0xff]
      %v165 = vld [vmem:[#allocation8 + $0x28] sm:$0xff]
      %v166 = vld [vmem:[#allocation8 + $0x30] sm:$0xff]
      %v167 = vld [vmem:[#allocation8 + $0x38] sm:$0xff]
      %v168 = vld [vmem:[#allocation8 + $0x40] sm:$0xff]
      %v169 = vld [vmem:[#allocation8 + $0x48] sm:$0xff]
      %v170 = vld [vmem:[#allocation8 + $0x50] sm:$0xff]
      %v171 = vld [vmem:[#allocation8 + $0x58] sm:$0xff]
      %v172 = vld [vmem:[#allocation8 + $0x60] sm:$0xff]
      %v173 = vld [vmem:[#allocation8 + $0x68] sm:$0xff]
      %v174 = vld [vmem:[#allocation8 + $0x70] sm:$0xff]
      %v175 = vld [vmem:[#allocation8 + $0x78] sm:$0xff]
      %v176 = vld [vmem:[%s4] sm:$0x1]
      %v178 = vlaneseq
      %v179 = vshrl.u32 %v178, 7
      %v180 = vsub.s32 0, %v179
      %v181 = vrot.slane %v176, %v180
      %183 = vmatprep.subr.mxu0 0.0
      %184 = vmatpush1.msra.mxu0 %v175
      %185 = vmatprep.subr.mxu0 0.0
      %186 = vmatpush1.msra.mxu0 %v174
      %187 = vmatprep.subr.mxu0 0.0
      %188 = vmatpush1.msra.mxu0 %v173
      %189 = vmatprep.subr.mxu0 0.0
      %190 = vmatpush1.msra.mxu0 %v172
      %191 = vmatprep.subr.mxu0 0.0
      %192 = vmatpush1.msra.mxu0 %v171
      %193 = vmatprep.subr.mxu0 0.0
      %194 = vmatpush1.msra.mxu0 %v170
      %195 = vmatprep.subr.mxu0 0.0
      %196 = vmatpush1.msra.mxu0 %v169
      %197 = vmatprep.subr.mxu0 0.0
      %198 = vmatpush1.msra.mxu0 %v168
      %199 = vmatprep.subr.mxu0 0.0
      %200 = vmatpush1.msra.mxu0 %v167
      %201 = vmatprep.subr.mxu0 0.0
      %202 = vmatpush1.msra.mxu0 %v166
      %203 = vmatprep.subr.mxu0 0.0
      %204 = vmatpush1.msra.mxu0 %v165
      %205 = vmatprep.subr.mxu0 0.0
      %206 = vmatpush1.msra.mxu0 %v164
      %207 = vmatprep.subr.mxu0 0.0
      %208 = vmatpush1.msra.mxu0 %v163
      %209 = vmatprep.subr.mxu0 0.0
      %210 = vmatpush1.msra.mxu0 %v162
      %211 = vmatprep.subr.mxu0 0.0
      %212 = vmatpush1.msra.mxu0 %v161
      %213 = vmatprep.subr.mxu0 0.0
      %214 = vmatpush1.msra.mxu0 %v160
      %215 = vmatprep.subr.mxu0 0.0
      %216 = vmatpush2.msra.mxu0 0.0
      %217 = vmatprep.subr.mxu0 0.0
      %218 = vmatpush2.msra.mxu0 0.0
      %219 = vmatprep.subr.mxu0 0.0
      %220 = vmatpush2.msra.mxu0 0.0
      %221 = vmatprep.subr.mxu0 0.0
      %222 = vmatpush2.msra.mxu0 0.0
      %223 = vmatprep.subr.mxu0 0.0
      %224 = vmatpush2.msra.mxu0 0.0
      %225 = vmatprep.subr.mxu0 0.0
      %226 = vmatpush2.msra.mxu0 0.0
      %227 = vmatprep.subr.mxu0 0.0
      %228 = vmatpush2.msra.mxu0 0.0
      %229 = vmatprep.subr.mxu0 0.0
      %230 = vmatpush2.msra.mxu0 0.0
      %231 = vmatprep.subr.mxu0 0.0
      %232 = vmatpush2.msra.mxu0 0.0
      %233 = vmatprep.subr.mxu0 0.0
      %234 = vmatpush2.msra.mxu0 0.0
      %235 = vmatprep.subr.mxu0 0.0
      %236 = vmatpush2.msra.mxu0 0.0
      %237 = vmatprep.subr.mxu0 0.0
      %238 = vmatpush2.msra.mxu0 0.0
      %239 = vmatprep.subr.mxu0 0.0
      %240 = vmatpush2.msra.mxu0 0.0
      %241 = vmatprep.subr.mxu0 0.0
      %242 = vmatpush2.msra.mxu0 0.0
      %243 = vmatprep.subr.mxu0 0.0
      %244 = vmatpush2.msra.mxu0 0.0
      %245 = vmatprep.subr.mxu0 0.0
      %246 = vmatpush2.msra.mxu0 0.0
      %247 = vmatprep.mubr.f32.mxu0 0.0
      %248 = vmatmul.mubr.f32.gmra.mxu0 %v159
      %v249 = vpop.f32.mrf.mxu0
      %v250 = vadd.f32 %v181, %v249
      %v251 = vpop.f32.mrf.mxu0
      %252 = vdwg.mxu0
      %253 = vst [vmem:[#allocation9] sm:$0xff] %v250
    $region41: #{tpu_custom_call.1} parent=1 // pred_fallthru
      _
    // Predicated region
    $region42: #{tpu_custom_call.1} parent=1 // pred_check
      _
    $region43: #{tpu_custom_call.1} parent=1 // pred_check_branch
      %255 = sbr.rel (0) target = $region45
    $region44: #{tpu_custom_call.1} parent=1 // pred_region
      %s257 = ssub.s32 128, 128
      %258 = vsyncadd [#allocation5], %s257
      %s260 = sshll.u32 [#allocation9], 4
      %s261 = int_to_ptr.vmem [resolvable:$true] %s260
      %263 = dma.vmem_to_hbm [thread:$0]  %s261, 128, %s5, [#allocation5]
    $region45: #{tpu_custom_call.1} parent=1 // pred_fallthru
      _
    // Predicated region
    $region46: #{tpu_custom_call.1} parent=1 // pred_check
      _
    $region47: #{tpu_custom_call.1} parent=1 // pred_check_branch
      %265 = sbr.rel (0) target = $region49
    $region48: #{tpu_custom_call.1} parent=1 // pred_region
      %266 = dma.done [#allocation5], 128
    $region49: #{tpu_custom_call.1} parent=1 // pred_fallthru
      _
    %267 = vsyncpa [#allocation4], 1
    %268 = vsyncpa [#allocation7], 1
    %269 = vsyncpa [#allocation5], 1

// kernel: tpu_custom_call.1
$region0: #{tpu_custom_call.1}
  #allocation0 [shape = 'u32[]', space=smem, size = 0x4, offset = 0x4, fixed_abs, tag = 'smem constant byte address 0x4 - core index']
  #allocation1 [shape = 'u32[144,128]{1,0:T(1,128)}', space=vmem, size = 0x12000, scoped, tag = 'internal scratch']
  #allocation2 [shape = 'f32[8,128]{1,0:T(8,128)}', space=vmem, size = 0x1000, scoped, tag = 'scratch operand']
  %s0 = inlined_call_operand.hbm [shape: f32[8,32], index: 0, kind: input, shape index: {}]
  %s1 = inlined_call_operand.hbm [shape: f32[32,128], index: 1, kind: input, shape index: {}]
  %s2 = inlined_call_operand.vmem [shape: f32[1,128], index: 2, kind: input, shape index: {}]
  %s3 = inlined_call_operand.hbm [shape: f32[128,128], index: 3, kind: input, shape index: {}]
  %s4 = inlined_call_operand.vmem [shape: f32[1,128], index: 4, kind: input, shape index: {}]
  %s5 = inlined_call_operand.hbm [shape: f32[8,128], index: 5, kind: output, shape index: {}]
  %s6 = sld [smem:[#allocation0]]
  $region50: #{tpu_custom_call.1} parent=0
    _
  %s8 = ssub.s32 1, %s6
  %s9 = scalar_select 0, %s8, %s6
  $region1: #{tpu_custom_call.1} parent=0
    #allocation3 [shape = 'u8[4096]{0}', space=vmem, size = 0x1000, scoped, tag = 'input window, operand 0, single buffered']
    #allocation4 [shape = 's32[1]{0}', space=sflag, size = 0x4, scoped, tag = 'scoped memory for tpu_custom_call.1']
    #allocation5 [shape = 's32[1]{0}', space=sflag, size = 0x4, scoped, tag = 'scoped memory for tpu_custom_call.1']
    #allocation6 [shape = 'u8[16384]{0}', space=vmem, size = 0x4000, scoped, tag = 'input window, operand 1, single buffered']
    #allocation7 [shape = 's32[1]{0}', space=sflag, size = 0x4, scoped, tag = 'scoped memory for tpu_custom_call.1']
    #allocation8 [shape = 'u8[65536]{0}', space=vmem, size = 0x10000, scoped, tag = 'input window, operand 3, single buffered']
    #allocation9 [shape = 'u8[4096]{0}', space=vmem, size = 0x1000, scoped, tag = 'output window, operand 0, single buffered']
    %10 = vsyncpa [#allocation4], 0
    %11 = vsyncpa [#allocation7], 0
    %12 = vsyncpa [#allocation5], 0
    // Predicated region
    $region2: #{tpu_custom_call.1} parent=1 // pred_check
      _
    $region3: #{tpu_custom_call.1} parent=1 // pred_check_branch
      %14 = sbr.rel (0) target = $region5
    $region4: #{tpu_custom_call.1} parent=1 // pred_region
      %s16 = ssub.s32 128, 128
      %17 = vsyncadd [#allocation4], %s16
      %s19 = sshll.u32 [#allocation3], 4
      %s20 = int_to_ptr.vmem [resolvable:$true] %s19
      %22 = dma.hbm_to_vmem [thread:$0]  %s0, 128, %s20, [#allocation4]
    $region5: #{tpu_custom_call.1} parent=1 // pred_fallthru
      _
    // Predicated region
    $region6: #{tpu_custom_call.1} parent=1 // pred_check
      _
    $region7: #{tpu_custom_call.1} parent=1 // pred_check_branch
      %24 = sbr.rel (0) target = $region9
    $region8: #{tpu_custom_call.1} parent=1 // pred_region
      %s26 = ssub.s32 512, 512
      %27 = vsyncadd [#allocation7], %s26
      %s28 = sshll.u32 [#allocation6], 4
      %s29 = int_to_ptr.vmem [resolvable:$true] %s28
      %34 = dma.hbm_to_vmem [thread:$0]  %s1, 512, %s29, [#allocation7], 128, 128, 8
    $region9: #{tpu_custom_call.1} parent=1 // pred_fallthru
      _
    // Predicated region
    $region10: #{tpu_custom_call.1} parent=1 // pred_check
      _
    $region11: #{tpu_custom_call.1} parent=1 // pred_check_branch
      %36 = sbr.rel (0) target = $region13
    $region12: #{tpu_custom_call.1} parent=1 // pred_region
      _
    $region13: #{tpu_custom_call.1} parent=1 // pred_fallthru
      _
    // Predicated region
    $region14: #{tpu_custom_call.1} parent=1 // pred_check
      _
    $region15: #{tpu_custom_call.1} parent=1 // pred_check_branch
      %38 = sbr.rel (0) target = $region17
    $region16: #{tpu_custom_call.1} parent=1 // pred_region
      %s40 = ssub.s32 2048, 2048
      %41 = vsyncadd [#allocation7], %s40
      %s42 = sshll.u32 [#allocation8], 4
      %s43 = int_to_ptr.vmem [resolvable:$true] %s42
      %48 = dma.hbm_to_vmem [thread:$0]  %s3, 2048, %s43, [#allocation7], 128, 128, 8
    $region17: #{tpu_custom_call.1} parent=1 // pred_fallthru
      _
    // Predicated region
    $region18: #{tpu_custom_call.1} parent=1 // pred_check
      _
    $region19: #{tpu_custom_call.1} parent=1 // pred_check_branch
      %50 = sbr.rel (0) target = $region21
    $region20: #{tpu_custom_call.1} parent=1 // pred_region
      _
    $region21: #{tpu_custom_call.1} parent=1 // pred_fallthru
      _
    // Predicated region
    $region22: #{tpu_custom_call.1} parent=1 // pred_check
      _
    $region23: #{tpu_custom_call.1} parent=1 // pred_check_branch
      %52 = sbr.rel (0) target = $region25
    $region24: #{tpu_custom_call.1} parent=1 // pred_region
      %53 = dma.done [#allocation4], 128
    $region25: #{tpu_custom_call.1} parent=1 // pred_fallthru
      _
    // Predicated region
    $region26: #{tpu_custom_call.1} parent=1 // pred_check
      _
    $region27: #{tpu_custom_call.1} parent=1 // pred_check_branch
      %55 = sbr.rel (0) target = $region29
    $region28: #{tpu_custom_call.1} parent=1 // pred_region
      %56 = dma.done [#allocation7], 512
    $region29: #{tpu_custom_call.1} parent=1 // pred_fallthru
      _
    // Predicated region
    $region30: #{tpu_custom_call.1} parent=1 // pred_check
      _
    $region31: #{tpu_custom_call.1} parent=1 // pred_check_branch
      %58 = sbr.rel (0) target = $region33
    $region32: #{tpu_custom_call.1} parent=1 // pred_region
      %59 = dma.done [#allocation7], 2048
    $region33: #{tpu_custom_call.1} parent=1 // pred_fallthru
      _
    %p60 = scmp.eq.s32.totalorder 0, 0
    // Predicated region
    $region34: #{tpu_custom_call.1} parent=1 // pred_check
      %p61 = pneg %p60
    $region35: #{tpu_custom_call.1} parent=1 // pred_check_branch
      %63 = sbr.rel (%p61) target = $region37
    $region36: #{tpu_custom_call.1} parent=1 // pred_region
      %64 = vst [vmem:[#allocation2] sm:$0xff] 0.0
    $region37: #{tpu_custom_call.1} parent=1 // pred_fallthru
      _
    %v65 = vld [vmem:[#allocation3] sm:$0xff]
    %v66 = vld [vmem:[#allocation6] sm:$0xff]
    %v67 = vld [vmem:[#allocation6 + $0x8] sm:$0xff]
    %v68 = vld [vmem:[#allocation6 + $0x10] sm:$0xff]
    %v69 = vld [vmem:[#allocation6 + $0x18] sm:$0xff]
    %v70 = vld [vmem:[#allocation2] sm:$0xff]
    %vm71 = vcmask 261120
    %v73 = vsel %vm71, %v65, 0
    %75 = vmatprep.subr.mxu0 0.0
    %76 = vmatpush1.msra.mxu0 0.0
    %77 = vmatprep.subr.mxu0 0.0
    %78 = vmatpush1.msra.mxu0 0.0
    %79 = vmatprep.subr.mxu0 0.0
    %80 = vmatpush1.msra.mxu0 0.0
    %81 = vmatprep.subr.mxu0 0.0
    %82 = vmatpush1.msra.mxu0 0.0
    %83 = vmatprep.subr.mxu0 0.0
    %84 = vmatpush1.msra.mxu0 0.0
    %85 = vmatprep.subr.mxu0 0.0
    %86 = vmatpush1.msra.mxu0 0.0
    %87 = vmatprep.subr.mxu0 0.0
    %88 = vmatpush1.msra.mxu0 0.0
    %89 = vmatprep.subr.mxu0 0.0
    %90 = vmatpush1.msra.mxu0 0.0
    %91 = vmatprep.subr.mxu0 0.0
    %92 = vmatpush1.msra.mxu0 0.0
    %93 = vmatprep.subr.mxu0 0.0
    %94 = vmatpush1.msra.mxu0 0.0
    %95 = vmatprep.subr.mxu0 0.0
    %96 = vmatpush1.msra.mxu0 0.0
    %97 = vmatprep.subr.mxu0 0.0
    %98 = vmatpush1.msra.mxu0 0.0
    %99 = vmatprep.subr.mxu0 0.0
    %100 = vmatpush1.msra.mxu0 %v69
    %101 = vmatprep.subr.mxu0 0.0
    %102 = vmatpush1.msra.mxu0 %v68
    %103 = vmatprep.subr.mxu0 0.0
    %104 = vmatpush1.msra.mxu0 %v67
    %105 = vmatprep.subr.mxu0 0.0
    %106 = vmatpush1.msra.mxu0 %v66
    %107 = vmatprep.subr.mxu0 0.0
    %108 = vmatpush2.msra.mxu0 0.0
    %109 = vmatprep.subr.mxu0 0.0
    %110 = vmatpush2.msra.mxu0 0.0
    %111 = vmatprep.subr.mxu0 0.0
    %112 = vmatpush2.msra.mxu0 0.0
    %113 = vmatprep.subr.mxu0 0.0
    %114 = vmatpush2.msra.mxu0 0.0
    %115 = vmatprep.subr.mxu0 0.0
    %116 = vmatpush2.msra.mxu0 0.0
    %117 = vmatprep.subr.mxu0 0.0
    %118 = vmatpush2.msra.mxu0 0.0
    %119 = vmatprep.subr.mxu0 0.0
    %120 = vmatpush2.msra.mxu0 0.0
    %121 = vmatprep.subr.mxu0 0.0
    %122 = vmatpush2.msra.mxu0 0.0
    %123 = vmatprep.subr.mxu0 0.0
    %124 = vmatpush2.msra.mxu0 0.0
    %125 = vmatprep.subr.mxu0 0.0
    %126 = vmatpush2.msra.mxu0 0.0
    %127 = vmatprep.subr.mxu0 0.0
    %128 = vmatpush2.msra.mxu0 0.0
    %129 = vmatprep.subr.mxu0 0.0
    %130 = vmatpush2.msra.mxu0 0.0
    %131 = vmatprep.subr.mxu0 0.0
    %132 = vmatpush2.msra.mxu0 0.0
    %133 = vmatprep.subr.mxu0 0.0
    %134 = vmatpush2.msra.mxu0 0.0
    %135 = vmatprep.subr.mxu0 0.0
    %136 = vmatpush2.msra.mxu0 0.0
    %137 = vmatprep.subr.mxu0 0.0
    %138 = vmatpush2.msra.mxu0 0.0
    %139 = vmatprep.mubr.f32.mxu0 0.0
    %140 = vmatmul.mubr.f32.gmra.mxu0 %v73
    %v141 = vpop.f32.mrf.mxu0
    %v142 = vadd.f32 0.0, %v141
    %v143 = vpop.f32.mrf.mxu0
    %144 = vdwg.mxu0
    %v145 = vadd.f32 %v70, %v142
    %146 = vst [vmem:[#allocation2] sm:$0xff] %v145
    // Predicated region
    $region38: #{tpu_custom_call.1} parent=1 // pred_check
      %p147 = pneg %p60
    $region39: #{tpu_custom_call.1} parent=1 // pred_check_branch
      %149 = sbr.rel (%p147) target = $region41
    $region40: #{tpu_custom_call.1} parent=1 // pred_region
      %v150 = vld [vmem:[#allocation2] sm:$0xff]
      %v151 = vld [vmem:[%s2] sm:$0x1]
      %v153 = vlaneseq
      %v154 = vshrl.u32 %v153, 7
      %v155 = vsub.s32 0, %v154
      %v156 = vrot.slane %v151, %v155
      %v158 = vadd.f32 %v150, %v156
      %v159 = vmax.f32 %v158, 0.0
      %v160 = vld [vmem:[#allocation8] sm:$0xff]
      %v161 = vld [vmem:[#allocation8 + $0x8] sm:$0xff]
      %v162 = vld [vmem:[#allocation8 + $0x10] sm:$0xff]
      %v163 = vld [vmem:[#allocation8 + $0x18] sm:$0xff]
      %v164 = vld [vmem:[#allocation8 + $0x20] sm:$0xff]
      %v165 = vld [vmem:[#allocation8 + $0x28] sm:$0xff]
      %v166 = vld [vmem:[#allocation8 + $0x30] sm:$0xff]
      %v167 = vld [vmem:[#allocation8 + $0x38] sm:$0xff]
      %v168 = vld [vmem:[#allocation8 + $0x40] sm:$0xff]
      %v169 = vld [vmem:[#allocation8 + $0x48] sm:$0xff]
      %v170 = vld [vmem:[#allocation8 + $0x50] sm:$0xff]
      %v171 = vld [vmem:[#allocation8 + $0x58] sm:$0xff]
      %v172 = vld [vmem:[#allocation8 + $0x60] sm:$0xff]
      %v173 = vld [vmem:[#allocation8 + $0x68] sm:$0xff]
      %v174 = vld [vmem:[#allocation8 + $0x70] sm:$0xff]
      %v175 = vld [vmem:[#allocation8 + $0x78] sm:$0xff]
      %v176 = vld [vmem:[%s4] sm:$0x1]
      %v178 = vlaneseq
      %v179 = vshrl.u32 %v178, 7
      %v180 = vsub.s32 0, %v179
      %v181 = vrot.slane %v176, %v180
      %183 = vmatprep.subr.mxu0 0.0
      %184 = vmatpush1.msra.mxu0 %v175
      %185 = vmatprep.subr.mxu0 0.0
      %186 = vmatpush1.msra.mxu0 %v174
      %187 = vmatprep.subr.mxu0 0.0
      %188 = vmatpush1.msra.mxu0 %v173
      %189 = vmatprep.subr.mxu0 0.0
      %190 = vmatpush1.msra.mxu0 %v172
      %191 = vmatprep.subr.mxu0 0.0
      %192 = vmatpush1.msra.mxu0 %v171
      %193 = vmatprep.subr.mxu0 0.0
      %194 = vmatpush1.msra.mxu0 %v170
      %195 = vmatprep.subr.mxu0 0.0
      %196 = vmatpush1.msra.mxu0 %v169
      %197 = vmatprep.subr.mxu0 0.0
      %198 = vmatpush1.msra.mxu0 %v168
      %199 = vmatprep.subr.mxu0 0.0
      %200 = vmatpush1.msra.mxu0 %v167
      %201 = vmatprep.subr.mxu0 0.0
      %202 = vmatpush1.msra.mxu0 %v166
      %203 = vmatprep.subr.mxu0 0.0
      %204 = vmatpush1.msra.mxu0 %v165
      %205 = vmatprep.subr.mxu0 0.0
      %206 = vmatpush1.msra.mxu0 %v164
      %207 = vmatprep.subr.mxu0 0.0
      %208 = vmatpush1.msra.mxu0 %v163
      %209 = vmatprep.subr.mxu0 0.0
      %210 = vmatpush1.msra.mxu0 %v162
      %211 = vmatprep.subr.mxu0 0.0
      %212 = vmatpush1.msra.mxu0 %v161
      %213 = vmatprep.subr.mxu0 0.0
      %214 = vmatpush1.msra.mxu0 %v160
      %215 = vmatprep.subr.mxu0 0.0
      %216 = vmatpush2.msra.mxu0 0.0
      %217 = vmatprep.subr.mxu0 0.0
      %218 = vmatpush2.msra.mxu0 0.0
      %219 = vmatprep.subr.mxu0 0.0
      %220 = vmatpush2.msra.mxu0 0.0
      %221 = vmatprep.subr.mxu0 0.0
      %222 = vmatpush2.msra.mxu0 0.0
      %223 = vmatprep.subr.mxu0 0.0
      %224 = vmatpush2.msra.mxu0 0.0
      %225 = vmatprep.subr.mxu0 0.0
      %226 = vmatpush2.msra.mxu0 0.0
      %227 = vmatprep.subr.mxu0 0.0
      %228 = vmatpush2.msra.mxu0 0.0
      %229 = vmatprep.subr.mxu0 0.0
      %230 = vmatpush2.msra.mxu0 0.0
      %231 = vmatprep.subr.mxu0 0.0
      %232 = vmatpush2.msra.mxu0 0.0
      %233 = vmatprep.subr.mxu0 0.0
      %234 = vmatpush2.msra.mxu0 0.0
      %235 = vmatprep.subr.mxu0 0.0
      %236 = vmatpush2.msra.mxu0 0.0
      %237 = vmatprep.subr.mxu0 0.0
      %238 = vmatpush2.msra.mxu0 0.0
      %239 = vmatprep.subr.mxu0 0.0
      %240 = vmatpush2.msra.mxu0 0.0
      %241 = vmatprep.subr.mxu0 0.0
      %242 = vmatpush2.msra.mxu0 0.0
      %243 = vmatprep.subr.mxu0 0.0
      %244 = vmatpush2.msra.mxu0 0.0
      %245 = vmatprep.subr.mxu0 0.0
      %246 = vmatpush2.msra.mxu0 0.0
      %247 = vmatprep.mubr.f32.mxu0 0.0
      %248 = vmatmul.mubr.f32.gmra.mxu0 %v159
      %v249 = vpop.f32.mrf.mxu0
      %v250 = vadd.f32 %v181, %v249
      %v251 = vpop.f32.mrf.mxu0
      %252 = vdwg.mxu0
      %253 = vst [vmem:[#allocation9] sm:$0xff] %v250
    $region41: #{tpu_custom_call.1} parent=1 // pred_fallthru
      _
    // Predicated region
    $region42: #{tpu_custom_call.1} parent=1 // pred_check
      _
    $region43: #{tpu_custom_call.1} parent=1 // pred_check_branch
      %255 = sbr.rel (0) target = $region45
    $region44: #{tpu_custom_call.1} parent=1 // pred_region
      %s257 = ssub.s32 128, 128
      %258 = vsyncadd [#allocation5], %s257
      %s260 = sshll.u32 [#allocation9], 4
      %s261 = int_to_ptr.vmem [resolvable:$true] %s260
      %263 = dma.vmem_to_hbm [thread:$0]  %s261, 128, %s5, [#allocation5]
    $region45: #{tpu_custom_call.1} parent=1 // pred_fallthru
      _
    // Predicated region
    $region46: #{tpu_custom_call.1} parent=1 // pred_check
      _
    $region47: #{tpu_custom_call.1} parent=1 // pred_check_branch
      %265 = sbr.rel (0) target = $region49
    $region48: #{tpu_custom_call.1} parent=1 // pred_region
      %266 = dma.done [#allocation5], 128
    $region49: #{tpu_custom_call.1} parent=1 // pred_fallthru
      _
    %267 = vsyncpa [#allocation4], 1
    %268 = vsyncpa [#allocation7], 1
    %269 = vsyncpa [#allocation5], 1

</llo_original>
